<compile_context>
chip_gen: v6e
topology: v6e:2x2x1
jax: 0.10.0
libtpu: 0.0.40
codegen_flags: <defaults>
</compile_context>

<pallas_src>
import jax
import jax.numpy as jnp
import numpy as np
from jax import lax
from jax.experimental import pallas as pl
from jax.experimental.pallas import tpu as pltpu

BN_EPS = 1e-5
LANES = 128  # pad the channel axis to full lane width


def fused_conv_bn_relu_pool_kernel(p_ref, w_ref, b_ref, g_ref, beta_ref, o_ref):
    # p_ref:    (4*Mq, K)  im2col patches, rows ordered (h%2, w%2, n, h//2, w//2)
    # w_ref:    (K, Cp)    folded conv weights, channel axis zero-padded to Cp lanes
    # b/g/beta: (1, Cp)    conv bias / BN gamma / BN beta, zero-padded
    # o_ref:    (Mq, Cp)   pooled output, rows ordered (n, h//2, w//2)
    mq = o_ref.shape[0]
    m = p_ref.shape[0]

    # Convolution: single MXU matmul over the folded (tap, ci) contraction, plus bias.
    acc = jnp.dot(p_ref[...], w_ref[...], preferred_element_type=jnp.float32)
    acc = acc + b_ref[...]

    # BatchNorm2d (training mode): per-channel batch stats over all N*Ho*Wo positions
    # (= all rows).  One pass: sum and sum-of-squares, var = E[x^2] - mean^2.
    inv_m = 1.0 / m
    mean = jnp.sum(acc, axis=0, keepdims=True) * inv_m
    ex2 = jnp.sum(acc * acc, axis=0, keepdims=True) * inv_m
    var = ex2 - mean * mean
    scale = g_ref[...] * lax.rsqrt(var + BN_EPS)
    shift = beta_ref[...] - mean * scale
    y = acc * scale + shift

    # 2x2/stride-2 max-pool: the four pooling partners of each output position live in four
    # contiguous row blocks of size Mq (quadrant-major row order), so the pool is 3 maxima.
    pooled = jnp.maximum(jnp.maximum(y[0 * mq:1 * mq, :], y[1 * mq:2 * mq, :]),
                         jnp.maximum(y[2 * mq:3 * mq, :], y[3 * mq:4 * mq, :]))
    # ReLU commutes with max (monotone), so apply it once on the pooled slab.
    o_ref[...] = jnp.maximum(pooled, 0.0)


def single_conv_layer(x_nchw, w, b, gamma, beta):
    """Forward of SingleConvLayer. x_nchw: (N,Ci,H,W), w: (Co,Ci,KH,KW) -> (N,Co,Hp,Wp)."""
    n, ci, h, wd = x_nchw.shape
    co, _, kh, kw = w.shape
    ho, wo = h - kh + 1, wd - kw + 1
    assert ho % 2 == 0 and wo % 2 == 0, "even conv output assumed (matches MaxPool2d floor here)"
    hp, wp = ho // 2, wo // 2
    mq = n * hp * wp           # pooled positions
    m = 4 * mq                 # conv output positions
    k = kh * kw * ci
    cp = ((co + LANES - 1) // LANES) * LANES  # channel axis padded to a lane multiple

    x = jnp.transpose(x_nchw, (0, 2, 3, 1)).astype(jnp.float32)  # NHWC (channels on lanes)

    # im2col with quadrant-major row order (h%2, w%2, n, h//2, w//2) and (tap, ci) columns.
    # NOTE: this (M, K) slab is still materialized by XLA in HBM (~K/Ci x input bytes); at
    # production sizes it should instead be built in-kernel from the NHWC input via per-tap
    # ref slices into a VMEM scratch.  At these shapes the traffic is negligible and the
    # single K=36 MXU dot it enables is the bigger win.
    cols = []
    for di in range(kh):
        for dj in range(kw):
            win = x[:, di:di + ho, dj:dj + wo, :]                 # (N, Ho, Wo, Ci)
            win = win.reshape(n, hp, 2, wp, 2, ci)
            win = jnp.transpose(win, (2, 4, 0, 1, 3, 5))          # (2, 2, N, Hp, Wp, Ci)
            cols.append(win.reshape(m, ci))
    patches = jnp.concatenate(cols, axis=1)                       # (M, K)

    # Folded weights / params, channel axis zero-padded (padded channels yield exact zeros).
    w2 = jnp.transpose(w, (2, 3, 1, 0)).reshape(k, co).astype(jnp.float32)
    w_p = jnp.zeros((k, cp), jnp.float32).at[:, :co].set(w2)
    b_p = jnp.zeros((1, cp), jnp.float32).at[:, :co].set(b)
    g_p = jnp.zeros((1, cp), jnp.float32).at[:, :co].set(gamma)
    bt_p = jnp.zeros((1, cp), jnp.float32).at[:, :co].set(beta)

    vmem = pl.BlockSpec(memory_space=pltpu.MemorySpace.VMEM)
    out = pl.pallas_call(
        fused_conv_bn_relu_pool_kernel,
        out_shape=jax.ShapeDtypeStruct((mq, cp), jnp.float32),
        in_specs=[vmem] * 5,
        out_specs=vmem,
    )(patches, w_p, b_p, g_p, bt_p)

    # (Mq, Cp) -> drop channel padding -> (N, Hp, Wp, Co) -> NCHW
    return jnp.transpose(out[:, :co].reshape(n, hp, wp, co), (0, 3, 1, 2))


def reference(x, w, b, gamma, beta):
    conv = lax.conv_general_dilated(x, w, (1, 1), "VALID",
                                    dimension_numbers=("NCHW", "OIHW", "NCHW"))
    conv = conv + b[None, :, None, None]
    mean = conv.mean(axis=(0, 2, 3), keepdims=True)
    var = ((conv - mean) ** 2).mean(axis=(0, 2, 3), keepdims=True)
    y = gamma[None, :, None, None] * (conv - mean) / jnp.sqrt(var + BN_EPS) \
        + beta[None, :, None, None]
    y = jnp.maximum(y, 0.0)
    nn, c, hh, ww = y.shape
    return y.reshape(nn, c, hh // 2, 2, ww // 2, 2).max(axis=(3, 5))


if __name__ == "__main__":
    N, Ci, H, W = 2, 4, 16, 16
    Co, K = 8, 3

    key = jax.random.PRNGKey(0)
    kx, kw, kb = jax.random.split(key, 3)
    x = jax.random.normal(kx, (N, Ci, H, W), jnp.float32)

    # Deterministic parameter init (PyTorch-style uniform bound for conv; BN affine = identity).
    bound = 1.0 / (Ci * K * K) ** 0.5
    w = jax.random.uniform(kw, (Co, Ci, K, K), jnp.float32, -bound, bound)
    b = jax.random.uniform(kb, (Co,), jnp.float32, -bound, bound)
    gamma = jnp.ones((Co,), jnp.float32)
    beta = jnp.zeros((Co,), jnp.float32)
    # TODO(synk): BatchNorm running_mean/running_var buffer updates (a training side effect)
    # are not modeled; only the forward output (batch statistics) is produced.

    out = jax.block_until_ready(single_conv_layer(x, w, b, gamma, beta))
    ref = jax.block_until_ready(reference(x, w, b, gamma, beta))

    assert out.shape == (N, Co, (H - K + 1) // 2, (W - K + 1) // 2)
    np.testing.assert_allclose(np.asarray(out), np.asarray(ref), atol=1e-4, rtol=1e-4)
    print("KERNEL_OK")
</pallas_src>

<mosaic_0001>
module attributes {stable_mosaic.version = 11 : i64} {
  func.func @fused_conv_bn_relu_pool_kernel(%arg0: memref<392x36xf32, #tpu.memory_space<vmem>>, %arg1: memref<36x128xf32, #tpu.memory_space<vmem>>, %arg2: memref<1x128xf32, #tpu.memory_space<vmem>>, %arg3: memref<1x128xf32, #tpu.memory_space<vmem>>, %arg4: memref<1x128xf32, #tpu.memory_space<vmem>>, %arg5: memref<98x128xf32, #tpu.memory_space<vmem>>) attributes {dimension_semantics = [], scalar_prefetch = 0 : i64, scratch_operands = 0 : i64, tpu.core_type = #tpu.core_type<tc>} {
    %c0 = arith.constant 0 : index
    %c0_0 = arith.constant 0 : index
    %0 = vector.load %arg0[%c0, %c0_0] : memref<392x36xf32, #tpu.memory_space<vmem>>, vector<392x36xf32>
    %c0_1 = arith.constant 0 : index
    %c0_2 = arith.constant 0 : index
    %1 = vector.load %arg1[%c0_1, %c0_2] : memref<36x128xf32, #tpu.memory_space<vmem>>, vector<36x128xf32>
    %cst = arith.constant dense<0.000000e+00> : vector<392x128xf32>
    %2 = tpu.matmul %0, %1, %cst {dimension_numbers = #tpu.dot_dimension_numbers<[1], [0], [0], [1], [0, 0, 1, 1], [], []>} : vector<392x36xf32>, vector<36x128xf32>, vector<392x128xf32> -> vector<392x128xf32>
    %c0_3 = arith.constant 0 : index
    %c0_4 = arith.constant 0 : index
    %3 = vector.load %arg2[%c0_3, %c0_4] : memref<1x128xf32, #tpu.memory_space<vmem>>, vector<1x128xf32>
    %4 = vector.broadcast %3 : vector<1x128xf32> to vector<392x128xf32>
    %5 = arith.addf %2, %4 : vector<392x128xf32>
    %cst_5 = arith.constant dense<0.000000e+00> : vector<128xf32>
    %6 = vector.multi_reduction <add>, %5, %cst_5 [0] : vector<392x128xf32> to vector<128xf32>
    %7 = vector.shape_cast %6 : vector<128xf32> to vector<1x128xf32>
    %cst_6 = arith.constant 0.00255102036 : f32
    %8 = vector.broadcast %cst_6 : f32 to vector<1x128xf32>
    %9 = arith.mulf %7, %8 : vector<1x128xf32>
    %10 = arith.mulf %5, %5 : vector<392x128xf32>
    %cst_7 = arith.constant dense<0.000000e+00> : vector<128xf32>
    %11 = vector.multi_reduction <add>, %10, %cst_7 [0] : vector<392x128xf32> to vector<128xf32>
    %12 = vector.shape_cast %11 : vector<128xf32> to vector<1x128xf32>
    %cst_8 = arith.constant 0.00255102036 : f32
    %13 = vector.broadcast %cst_8 : f32 to vector<1x128xf32>
    %14 = arith.mulf %12, %13 : vector<1x128xf32>
    %15 = arith.mulf %9, %9 : vector<1x128xf32>
    %16 = arith.subf %14, %15 : vector<1x128xf32>
    %c0_9 = arith.constant 0 : index
    %c0_10 = arith.constant 0 : index
    %17 = vector.load %arg3[%c0_9, %c0_10] : memref<1x128xf32, #tpu.memory_space<vmem>>, vector<1x128xf32>
    %cst_11 = arith.constant 9.99999974E-6 : f32
    %18 = vector.broadcast %cst_11 : f32 to vector<1x128xf32>
    %19 = arith.addf %16, %18 : vector<1x128xf32>
    %20 = math.rsqrt %19 : vector<1x128xf32>
    %21 = arith.mulf %17, %20 : vector<1x128xf32>
    %c0_12 = arith.constant 0 : index
    %c0_13 = arith.constant 0 : index
    %22 = vector.load %arg4[%c0_12, %c0_13] : memref<1x128xf32, #tpu.memory_space<vmem>>, vector<1x128xf32>
    %23 = arith.mulf %9, %21 : vector<1x128xf32>
    %24 = arith.subf %22, %23 : vector<1x128xf32>
    %25 = vector.broadcast %21 : vector<1x128xf32> to vector<392x128xf32>
    %26 = arith.mulf %5, %25 : vector<392x128xf32>
    %27 = vector.broadcast %24 : vector<1x128xf32> to vector<392x128xf32>
    %28 = arith.addf %26, %27 : vector<392x128xf32>
    %29 = vector.extract_strided_slice %28 {offsets = [0, 0], sizes = [98, 128], strides = [1, 1]} : vector<392x128xf32> to vector<98x128xf32>
    %30 = vector.extract_strided_slice %28 {offsets = [98, 0], sizes = [98, 128], strides = [1, 1]} : vector<392x128xf32> to vector<98x128xf32>
    %31 = arith.maximumf %29, %30 : vector<98x128xf32>
    %32 = vector.extract_strided_slice %28 {offsets = [196, 0], sizes = [98, 128], strides = [1, 1]} : vector<392x128xf32> to vector<98x128xf32>
    %33 = vector.extract_strided_slice %28 {offsets = [294, 0], sizes = [98, 128], strides = [1, 1]} : vector<392x128xf32> to vector<98x128xf32>
    %34 = arith.maximumf %32, %33 : vector<98x128xf32>
    %35 = arith.maximumf %31, %34 : vector<98x128xf32>
    %cst_14 = arith.constant 0.000000e+00 : f32
    %36 = vector.broadcast %cst_14 : f32 to vector<98x128xf32>
    %37 = arith.maximumf %35, %36 : vector<98x128xf32>
    %c0_15 = arith.constant 0 : index
    %c0_16 = arith.constant 0 : index
    %38 = vector.load %arg5[%c0_15, %c0_16] : memref<98x128xf32, #tpu.memory_space<vmem>>, vector<98x128xf32>
    tpu.vector_store %arg5[%c0_15, %c0_16], %37 {strides = array<i32>} : memref<98x128xf32, #tpu.memory_space<vmem>>, vector<98x128xf32>,
    return
  }
}

</mosaic_0001>

<llo_original>
// kernel: tpu_custom_call.1
$region0: #{tpu_custom_call.1}
  #allocation0 [shape = 'u32[]', space=smem, size = 0x4, offset = 0x4, fixed_abs, tag = 'smem constant byte address 0x4 - core index']
  #allocation1 [shape = 'u32[144,128]{1,0:T(1,128)}', space=vmem, size = 0x12000, scoped, tag = 'internal scratch']
  %s0 = inlined_call_operand.vmem [shape: f32[392,36], index: 0, kind: input, shape index: {}]
  %s1 = inlined_call_operand.vmem [shape: f32[36,128], index: 1, kind: input, shape index: {}]
  %s2 = inlined_call_operand.vmem [shape: f32[1,128], index: 2, kind: input, shape index: {}]
  %s3 = inlined_call_operand.vmem [shape: f32[1,128], index: 3, kind: input, shape index: {}]
  %s4 = inlined_call_operand.vmem [shape: f32[1,128], index: 4, kind: input, shape index: {}]
  %s5 = inlined_call_operand.hbm [shape: f32[98,128], index: 5, kind: output, shape index: {}]
  %s6 = sld [smem:[#allocation0]]
  $region30: #{tpu_custom_call.1} parent=0
    _
  %s8 = ssub.s32 1, %s6
  %s9 = scalar_select 0, %s8, %s6
  $region1: #{tpu_custom_call.1} parent=0
    #allocation2 [shape = 'u8[53248]{0}', space=vmem, size = 0xd000, scoped, tag = 'output window, operand 0, single buffered']
    #allocation3 [shape = 's32[1]{0}', space=sflag, size = 0x4, scoped, tag = 'scoped memory for tpu_custom_call.1']
    %10 = vsyncpa [#allocation3], 0
    // Predicated region
    $region2: #{tpu_custom_call.1} parent=1 // pred_check
      _
    $region3: #{tpu_custom_call.1} parent=1 // pred_check_branch
      %12 = sbr.rel (0) target = $region5
    $region4: #{tpu_custom_call.1} parent=1 // pred_region
      _
    $region5: #{tpu_custom_call.1} parent=1 // pred_fallthru
      _
    // Predicated region
    $region6: #{tpu_custom_call.1} parent=1 // pred_check
      _
    $region7: #{tpu_custom_call.1} parent=1 // pred_check_branch
      %14 = sbr.rel (0) target = $region9
    $region8: #{tpu_custom_call.1} parent=1 // pred_region
      _
    $region9: #{tpu_custom_call.1} parent=1 // pred_fallthru
      _
    // Predicated region
    $region10: #{tpu_custom_call.1} parent=1 // pred_check
      _
    $region11: #{tpu_custom_call.1} parent=1 // pred_check_branch
      %16 = sbr.rel (0) target = $region13
    $region12: #{tpu_custom_call.1} parent=1 // pred_region
      _
    $region13: #{tpu_custom_call.1} parent=1 // pred_fallthru
      _
    // Predicated region
    $region14: #{tpu_custom_call.1} parent=1 // pred_check
      _
    $region15: #{tpu_custom_call.1} parent=1 // pred_check_branch
      %18 = sbr.rel (0) target = $region17
    $region16: #{tpu_custom_call.1} parent=1 // pred_region
      _
    $region17: #{tpu_custom_call.1} parent=1 // pred_fallthru
      _
    // Predicated region
    $region18: #{tpu_custom_call.1} parent=1 // pred_check
      _
    $region19: #{tpu_custom_call.1} parent=1 // pred_check_branch
      %20 = sbr.rel (0) target = $region21
    $region20: #{tpu_custom_call.1} parent=1 // pred_region
      _
    $region21: #{tpu_custom_call.1} parent=1 // pred_fallthru
      _
    %v21 = vld [vmem:[%s0] sm:$0xff]
    %v22 = vld [vmem:[%s0 + $0x8] sm:$0xff]
    %v23 = vld [vmem:[%s0 + $0x10] sm:$0xff]
    %v24 = vld [vmem:[%s0 + $0x18] sm:$0xff]
    %v25 = vld [vmem:[%s0 + $0x20] sm:$0xff]
    %v26 = vld [vmem:[%s0 + $0x28] sm:$0xff]
    %v27 = vld [vmem:[%s0 + $0x30] sm:$0xff]
    %v28 = vld [vmem:[%s0 + $0x38] sm:$0xff]
    %v29 = vld [vmem:[%s0 + $0x40] sm:$0xff]
    %v30 = vld [vmem:[%s0 + $0x48] sm:$0xff]
    %v31 = vld [vmem:[%s0 + $0x50] sm:$0xff]
    %v32 = vld [vmem:[%s0 + $0x58] sm:$0xff]
    %v33 = vld [vmem:[%s0 + $0x60] sm:$0xff]
    %v34 = vld [vmem:[%s0 + $0x68] sm:$0xff]
    %v35 = vld [vmem:[%s0 + $0x70] sm:$0xff]
    %v36 = vld [vmem:[%s0 + $0x78] sm:$0xff]
    %v37 = vld [vmem:[%s0 + $0x80] sm:$0xff]
    %v38 = vld [vmem:[%s0 + $0x88] sm:$0xff]
    %v39 = vld [vmem:[%s0 + $0x90] sm:$0xff]
    %v40 = vld [vmem:[%s0 + $0x98] sm:$0xff]
    %v41 = vld [vmem:[%s0 + $0xa0] sm:$0xff]
    %v42 = vld [vmem:[%s0 + $0xa8] sm:$0xff]
    %v43 = vld [vmem:[%s0 + $0xb0] sm:$0xff]
    %v44 = vld [vmem:[%s0 + $0xb8] sm:$0xff]
    %v45 = vld [vmem:[%s0 + $0xc0] sm:$0xff]
    %v46 = vld [vmem:[%s0 + $0xc8] sm:$0xff]
    %v47 = vld [vmem:[%s0 + $0xd0] sm:$0xff]
    %v48 = vld [vmem:[%s0 + $0xd8] sm:$0xff]
    %v49 = vld [vmem:[%s0 + $0xe0] sm:$0xff]
    %v50 = vld [vmem:[%s0 + $0xe8] sm:$0xff]
    %v51 = vld [vmem:[%s0 + $0xf0] sm:$0xff]
    %v52 = vld [vmem:[%s0 + $0xf8] sm:$0xff]
    %v53 = vld [vmem:[%s0 + $0x100] sm:$0xff]
    %v54 = vld [vmem:[%s0 + $0x108] sm:$0xff]
    %v55 = vld [vmem:[%s0 + $0x110] sm:$0xff]
    %v56 = vld [vmem:[%s0 + $0x118] sm:$0xff]
    %v57 = vld [vmem:[%s0 + $0x120] sm:$0xff]
    %v58 = vld [vmem:[%s0 + $0x128] sm:$0xff]
    %v59 = vld [vmem:[%s0 + $0x130] sm:$0xff]
    %v60 = vld [vmem:[%s0 + $0x138] sm:$0xff]
    %v61 = vld [vmem:[%s0 + $0x140] sm:$0xff]
    %v62 = vld [vmem:[%s0 + $0x148] sm:$0xff]
    %v63 = vld [vmem:[%s0 + $0x150] sm:$0xff]
    %v64 = vld [vmem:[%s0 + $0x158] sm:$0xff]
    %v65 = vld [vmem:[%s0 + $0x160] sm:$0xff]
    %v66 = vld [vmem:[%s0 + $0x168] sm:$0xff]
    %v67 = vld [vmem:[%s0 + $0x170] sm:$0xff]
    %v68 = vld [vmem:[%s0 + $0x178] sm:$0xff]
    %v69 = vld [vmem:[%s0 + $0x180] sm:$0xff]
    %v70 = vld [vmem:[%s1] sm:$0xff]
    %v71 = vld [vmem:[%s1 + $0x8] sm:$0xff]
    %v72 = vld [vmem:[%s1 + $0x10] sm:$0xff]
    %v73 = vld [vmem:[%s1 + $0x18] sm:$0xff]
    %v74 = vld [vmem:[%s1 + $0x20] sm:$0xf]
    %v75 = vld [vmem:[%s2] sm:$0x1]
    %v77 = vlaneseq
    %v78 = vshrl.u32 %v77, 7
    %v79 = vsub.s32 0, %v78
    %v80 = vrot.slane %v75, %v79
    %vm82 = vcmask 293888
    %v84 = vsel %vm82, %v21, 0
    %v87 = vsel %vm82, %v22, 0
    %v90 = vsel %vm82, %v23, 0
    %v93 = vsel %vm82, %v24, 0
    %v96 = vsel %vm82, %v25, 0
    %v99 = vsel %vm82, %v26, 0
    %v102 = vsel %vm82, %v27, 0
    %v105 = vsel %vm82, %v28, 0
    %v108 = vsel %vm82, %v29, 0
    %v111 = vsel %vm82, %v30, 0
    %v114 = vsel %vm82, %v31, 0
    %v117 = vsel %vm82, %v32, 0
    %v120 = vsel %vm82, %v33, 0
    %v123 = vsel %vm82, %v34, 0
    %v126 = vsel %vm82, %v35, 0
    %v129 = vsel %vm82, %v36, 0
    %v132 = vsel %vm82, %v37, 0
    %v135 = vsel %vm82, %v38, 0
    %v138 = vsel %vm82, %v39, 0
    %v141 = vsel %vm82, %v40, 0
    %v144 = vsel %vm82, %v41, 0
    %v147 = vsel %vm82, %v42, 0
    %v150 = vsel %vm82, %v43, 0
    %v153 = vsel %vm82, %v44, 0
    %v156 = vsel %vm82, %v45, 0
    %v159 = vsel %vm82, %v46, 0
    %v162 = vsel %vm82, %v47, 0
    %v165 = vsel %vm82, %v48, 0
    %v168 = vsel %vm82, %v49, 0
    %v171 = vsel %vm82, %v50, 0
    %v174 = vsel %vm82, %v51, 0
    %v177 = vsel %vm82, %v52, 0
    %v180 = vsel %vm82, %v53, 0
    %v183 = vsel %vm82, %v54, 0
    %v186 = vsel %vm82, %v55, 0
    %v189 = vsel %vm82, %v56, 0
    %v192 = vsel %vm82, %v57, 0
    %v195 = vsel %vm82, %v58, 0
    %v198 = vsel %vm82, %v59, 0
    %v201 = vsel %vm82, %v60, 0
    %v204 = vsel %vm82, %v61, 0
    %v207 = vsel %vm82, %v62, 0
    %v210 = vsel %vm82, %v63, 0
    %v213 = vsel %vm82, %v64, 0
    %v216 = vsel %vm82, %v65, 0
    %v219 = vsel %vm82, %v66, 0
    %v222 = vsel %vm82, %v67, 0
    %v225 = vsel %vm82, %v68, 0
    %v228 = vsel %vm82, %v69, 0
    %vm230 = vcmask 1043456
    %v232 = vsel %vm230, %v74, 0
    %234 = vmatprep.subr.mxu0 0.0
    %235 = vmatpush1.msra.mxu0 0.0
    %236 = vmatprep.subr.mxu0 0.0
    %237 = vmatpush1.msra.mxu0 0.0
    %238 = vmatprep.subr.mxu0 0.0
    %239 = vmatpush1.msra.mxu0 0.0
    %240 = vmatprep.subr.mxu0 0.0
    %241 = vmatpush1.msra.mxu0 0.0
    %242 = vmatprep.subr.mxu0 0.0
    %243 = vmatpush1.msra.mxu0 0.0
    %244 = vmatprep.subr.mxu0 0.0
    %245 = vmatpush1.msra.mxu0 0.0
    %246 = vmatprep.subr.mxu0 0.0
    %247 = vmatpush1.msra.mxu0 0.0
    %248 = vmatprep.subr.mxu0 0.0
    %249 = vmatpush1.msra.mxu0 0.0
    %250 = vmatprep.subr.mxu0 0.0
    %251 = vmatpush1.msra.mxu0 0.0
    %252 = vmatprep.subr.mxu0 0.0
    %253 = vmatpush1.msra.mxu0 0.0
    %254 = vmatprep.subr.mxu0 0.0
    %255 = vmatpush1.msra.mxu0 0.0
    %256 = vmatprep.subr.mxu0 0.0
    %257 = vmatpush1.msra.mxu0 %v232
    %258 = vmatprep.subr.mxu0 0.0
    %259 = vmatpush1.msra.mxu0 %v73
    %260 = vmatprep.subr.mxu0 0.0
    %261 = vmatpush1.msra.mxu0 %v72
    %262 = vmatprep.subr.mxu0 0.0
    %263 = vmatpush1.msra.mxu0 %v71
    %264 = vmatprep.subr.mxu0 0.0
    %265 = vmatpush1.msra.mxu0 %v70
    %266 = vmatprep.subr.mxu0 0.0
    %267 = vmatpush2.msra.mxu0 0.0
    %268 = vmatprep.subr.mxu0 0.0
    %269 = vmatpush2.msra.mxu0 0.0
    %270 = vmatprep.subr.mxu0 0.0
    %271 = vmatpush2.msra.mxu0 0.0
    %272 = vmatprep.subr.mxu0 0.0
    %273 = vmatpush2.msra.mxu0 0.0
    %274 = vmatprep.subr.mxu0 0.0
    %275 = vmatpush2.msra.mxu0 0.0
    %276 = vmatprep.subr.mxu0 0.0
    %277 = vmatpush2.msra.mxu0 0.0
    %278 = vmatprep.subr.mxu0 0.0
    %279 = vmatpush2.msra.mxu0 0.0
    %280 = vmatprep.subr.mxu0 0.0
    %281 = vmatpush2.msra.mxu0 0.0
    %282 = vmatprep.subr.mxu0 0.0
    %283 = vmatpush2.msra.mxu0 0.0
    %284 = vmatprep.subr.mxu0 0.0
    %285 = vmatpush2.msra.mxu0 0.0
    %286 = vmatprep.subr.mxu0 0.0
    %287 = vmatpush2.msra.mxu0 0.0
    %288 = vmatprep.subr.mxu0 0.0
    %289 = vmatpush2.msra.mxu0 0.0
    %290 = vmatprep.subr.mxu0 0.0
    %291 = vmatpush2.msra.mxu0 0.0
    %292 = vmatprep.subr.mxu0 0.0
    %293 = vmatpush2.msra.mxu0 0.0
    %294 = vmatprep.subr.mxu0 0.0
    %295 = vmatpush2.msra.mxu0 0.0
    %296 = vmatprep.subr.mxu0 0.0
    %297 = vmatpush2.msra.mxu0 0.0
    %298 = vmatprep.mubr.f32.mxu0 0.0
    %299 = vmatmul.mubr.f32.gmra.mxu0 %v84
    %v300 = vpop.f32.mrf.mxu0
    %v301 = vadd.f32 %v80, %v300
    %v302 = vpop.f32.mrf.mxu0
    %303 = vmatprep.mubr.f32.mxu0 0.0
    %304 = vmatmul.mubr.f32.gmra.mxu0 %v87
    %v305 = vpop.f32.mrf.mxu0
    %v306 = vadd.f32 %v80, %v305
    %v307 = vpop.f32.mrf.mxu0
    %308 = vmatprep.mubr.f32.mxu0 0.0
    %309 = vmatmul.mubr.f32.gmra.mxu0 %v90
    %v310 = vpop.f32.mrf.mxu0
    %v311 = vadd.f32 %v80, %v310
    %v312 = vpop.f32.mrf.mxu0
    %313 = vmatprep.mubr.f32.mxu0 0.0
    %314 = vmatmul.mubr.f32.gmra.mxu0 %v93
    %v315 = vpop.f32.mrf.mxu0
    %v316 = vadd.f32 %v80, %v315
    %v317 = vpop.f32.mrf.mxu0
    %318 = vmatprep.mubr.f32.mxu0 0.0
    %319 = vmatmul.mubr.f32.gmra.mxu0 %v96
    %v320 = vpop.f32.mrf.mxu0
    %v321 = vadd.f32 %v80, %v320
    %v322 = vpop.f32.mrf.mxu0
    %323 = vmatprep.mubr.f32.mxu0 0.0
    %324 = vmatmul.mubr.f32.gmra.mxu0 %v99
    %v325 = vpop.f32.mrf.mxu0
    %v326 = vadd.f32 %v80, %v325
    %v327 = vpop.f32.mrf.mxu0
    %328 = vmatprep.mubr.f32.mxu0 0.0
    %329 = vmatmul.mubr.f32.gmra.mxu0 %v102
    %v330 = vpop.f32.mrf.mxu0
    %v331 = vadd.f32 %v80, %v330
    %v332 = vpop.f32.mrf.mxu0
    %333 = vmatprep.mubr.f32.mxu0 0.0
    %334 = vmatmul.mubr.f32.gmra.mxu0 %v105
    %v335 = vpop.f32.mrf.mxu0
    %v336 = vadd.f32 %v80, %v335
    %v337 = vpop.f32.mrf.mxu0
    %338 = vmatprep.mubr.f32.mxu0 0.0
    %339 = vmatmul.mubr.f32.gmra.mxu0 %v108
    %v340 = vpop.f32.mrf.mxu0
    %v341 = vadd.f32 %v80, %v340
    %v342 = vpop.f32.mrf.mxu0
    %343 = vmatprep.mubr.f32.mxu0 0.0
    %344 = vmatmul.mubr.f32.gmra.mxu0 %v111
    %v345 = vpop.f32.mrf.mxu0
    %v346 = vadd.f32 %v80, %v345
    %v347 = vpop.f32.mrf.mxu0
    %348 = vmatprep.mubr.f32.mxu0 0.0
    %349 = vmatmul.mubr.f32.gmra.mxu0 %v114
    %v350 = vpop.f32.mrf.mxu0
    %v351 = vadd.f32 %v80, %v350
    %v352 = vpop.f32.mrf.mxu0
    %353 = vmatprep.mubr.f32.mxu0 0.0
    %354 = vmatmul.mubr.f32.gmra.mxu0 %v117
    %v355 = vpop.f32.mrf.mxu0
    %v356 = vadd.f32 %v80, %v355
    %v357 = vpop.f32.mrf.mxu0
    %358 = vmatprep.mubr.f32.mxu0 0.0
    %359 = vmatmul.mubr.f32.gmra.mxu0 %v120
    %v360 = vpop.f32.mrf.mxu0
    %v361 = vadd.f32 %v80, %v360
    %v362 = vpop.f32.mrf.mxu0
    %363 = vmatprep.mubr.f32.mxu0 0.0
    %364 = vmatmul.mubr.f32.gmra.mxu0 %v123
    %v365 = vpop.f32.mrf.mxu0
    %v366 = vadd.f32 %v80, %v365
    %v367 = vpop.f32.mrf.mxu0
    %368 = vmatprep.mubr.f32.mxu0 0.0
    %369 = vmatmul.mubr.f32.gmra.mxu0 %v126
    %v370 = vpop.f32.mrf.mxu0
    %v371 = vadd.f32 %v80, %v370
    %v372 = vpop.f32.mrf.mxu0
    %373 = vmatprep.mubr.f32.mxu0 0.0
    %374 = vmatmul.mubr.f32.gmra.mxu0 %v129
    %v375 = vpop.f32.mrf.mxu0
    %v376 = vadd.f32 %v80, %v375
    %v377 = vpop.f32.mrf.mxu0
    %378 = vmatprep.mubr.f32.mxu0 0.0
    %379 = vmatmul.mubr.f32.gmra.mxu0 %v132
    %v380 = vpop.f32.mrf.mxu0
    %v381 = vadd.f32 %v80, %v380
    %v382 = vpop.f32.mrf.mxu0
    %383 = vmatprep.mubr.f32.mxu0 0.0
    %384 = vmatmul.mubr.f32.gmra.mxu0 %v135
    %v385 = vpop.f32.mrf.mxu0
    %v386 = vadd.f32 %v80, %v385
    %v387 = vpop.f32.mrf.mxu0
    %388 = vmatprep.mubr.f32.mxu0 0.0
    %389 = vmatmul.mubr.f32.gmra.mxu0 %v138
    %v390 = vpop.f32.mrf.mxu0
    %v391 = vadd.f32 %v80, %v390
    %v392 = vpop.f32.mrf.mxu0
    %393 = vmatprep.mubr.f32.mxu0 0.0
    %394 = vmatmul.mubr.f32.gmra.mxu0 %v141
    %v395 = vpop.f32.mrf.mxu0
    %v396 = vadd.f32 %v80, %v395
    %v397 = vpop.f32.mrf.mxu0
    %398 = vmatprep.mubr.f32.mxu0 0.0
    %399 = vmatmul.mubr.f32.gmra.mxu0 %v144
    %v400 = vpop.f32.mrf.mxu0
    %v401 = vadd.f32 %v80, %v400
    %v402 = vpop.f32.mrf.mxu0
    %403 = vmatprep.mubr.f32.mxu0 0.0
    %404 = vmatmul.mubr.f32.gmra.mxu0 %v147
    %v405 = vpop.f32.mrf.mxu0
    %v406 = vadd.f32 %v80, %v405
    %v407 = vpop.f32.mrf.mxu0
    %408 = vmatprep.mubr.f32.mxu0 0.0
    %409 = vmatmul.mubr.f32.gmra.mxu0 %v150
    %v410 = vpop.f32.mrf.mxu0
    %v411 = vadd.f32 %v80, %v410
    %v412 = vpop.f32.mrf.mxu0
    %413 = vmatprep.mubr.f32.mxu0 0.0
    %414 = vmatmul.mubr.f32.gmra.mxu0 %v153
    %v415 = vpop.f32.mrf.mxu0
    %v416 = vadd.f32 %v80, %v415
    %v417 = vpop.f32.mrf.mxu0
    %418 = vmatprep.mubr.f32.mxu0 0.0
    %419 = vmatmul.mubr.f32.gmra.mxu0 %v156
    %v420 = vpop.f32.mrf.mxu0
    %v421 = vadd.f32 %v80, %v420
    %v422 = vpop.f32.mrf.mxu0
    %423 = vmatprep.mubr.f32.mxu0 0.0
    %424 = vmatmul.mubr.f32.gmra.mxu0 %v159
    %v425 = vpop.f32.mrf.mxu0
    %v426 = vadd.f32 %v80, %v425
    %v427 = vpop.f32.mrf.mxu0
    %428 = vmatprep.mubr.f32.mxu0 0.0
    %429 = vmatmul.mubr.f32.gmra.mxu0 %v162
    %v430 = vpop.f32.mrf.mxu0
    %v431 = vadd.f32 %v80, %v430
    %v432 = vpop.f32.mrf.mxu0
    %433 = vmatprep.mubr.f32.mxu0 0.0
    %434 = vmatmul.mubr.f32.gmra.mxu0 %v165
    %v435 = vpop.f32.mrf.mxu0
    %v436 = vadd.f32 %v80, %v435
    %v437 = vpop.f32.mrf.mxu0
    %438 = vmatprep.mubr.f32.mxu0 0.0
    %439 = vmatmul.mubr.f32.gmra.mxu0 %v168
    %v440 = vpop.f32.mrf.mxu0
    %v441 = vadd.f32 %v80, %v440
    %v442 = vpop.f32.mrf.mxu0
    %443 = vmatprep.mubr.f32.mxu0 0.0
    %444 = vmatmul.mubr.f32.gmra.mxu0 %v171
    %v445 = vpop.f32.mrf.mxu0
    %v446 = vadd.f32 %v80, %v445
    %v447 = vpop.f32.mrf.mxu0
    %448 = vmatprep.mubr.f32.mxu0 0.0
    %449 = vmatmul.mubr.f32.gmra.mxu0 %v174
    %v450 = vpop.f32.mrf.mxu0
    %v451 = vadd.f32 %v80, %v450
    %v452 = vpop.f32.mrf.mxu0
    %453 = vmatprep.mubr.f32.mxu0 0.0
    %454 = vmatmul.mubr.f32.gmra.mxu0 %v177
    %v455 = vpop.f32.mrf.mxu0
    %v456 = vadd.f32 %v80, %v455
    %v457 = vpop.f32.mrf.mxu0
    %458 = vmatprep.mubr.f32.mxu0 0.0
    %459 = vmatmul.mubr.f32.gmra.mxu0 %v180
    %v460 = vpop.f32.mrf.mxu0
    %v461 = vadd.f32 %v80, %v460
    %v462 = vpop.f32.mrf.mxu0
    %463 = vmatprep.mubr.f32.mxu0 0.0
    %464 = vmatmul.mubr.f32.gmra.mxu0 %v183
    %v465 = vpop.f32.mrf.mxu0
    %v466 = vadd.f32 %v80, %v465
    %v467 = vpop.f32.mrf.mxu0
    %468 = vmatprep.mubr.f32.mxu0 0.0
    %469 = vmatmul.mubr.f32.gmra.mxu0 %v186
    %v470 = vpop.f32.mrf.mxu0
    %v471 = vadd.f32 %v80, %v470
    %v472 = vpop.f32.mrf.mxu0
    %473 = vmatprep.mubr.f32.mxu0 0.0
    %474 = vmatmul.mubr.f32.gmra.mxu0 %v189
    %v475 = vpop.f32.mrf.mxu0
    %v476 = vadd.f32 %v80, %v475
    %v477 = vpop.f32.mrf.mxu0
    %478 = vmatprep.mubr.f32.mxu0 0.0
    %479 = vmatmul.mubr.f32.gmra.mxu0 %v192
    %v480 = vpop.f32.mrf.mxu0
    %v481 = vadd.f32 %v80, %v480
    %v482 = vpop.f32.mrf.mxu0
    %483 = vmatprep.mubr.f32.mxu0 0.0
    %484 = vmatmul.mubr.f32.gmra.mxu0 %v195
    %v485 = vpop.f32.mrf.mxu0
    %v486 = vadd.f32 %v80, %v485
    %v487 = vpop.f32.mrf.mxu0
    %488 = vmatprep.mubr.f32.mxu0 0.0
    %489 = vmatmul.mubr.f32.gmra.mxu0 %v198
    %v490 = vpop.f32.mrf.mxu0
    %v491 = vadd.f32 %v80, %v490
    %v492 = vpop.f32.mrf.mxu0
    %493 = vmatprep.mubr.f32.mxu0 0.0
    %494 = vmatmul.mubr.f32.gmra.mxu0 %v201
    %v495 = vpop.f32.mrf.mxu0
    %v496 = vadd.f32 %v80, %v495
    %v497 = vpop.f32.mrf.mxu0
    %498 = vmatprep.mubr.f32.mxu0 0.0
    %499 = vmatmul.mubr.f32.gmra.mxu0 %v204
    %v500 = vpop.f32.mrf.mxu0
    %v501 = vadd.f32 %v80, %v500
    %v502 = vpop.f32.mrf.mxu0
    %503 = vmatprep.mubr.f32.mxu0 0.0
    %504 = vmatmul.mubr.f32.gmra.mxu0 %v207
    %v505 = vpop.f32.mrf.mxu0
    %v506 = vadd.f32 %v80, %v505
    %v507 = vpop.f32.mrf.mxu0
    %508 = vmatprep.mubr.f32.mxu0 0.0
    %509 = vmatmul.mubr.f32.gmra.mxu0 %v210
    %v510 = vpop.f32.mrf.mxu0
    %v511 = vadd.f32 %v80, %v510
    %v512 = vpop.f32.mrf.mxu0
    %513 = vmatprep.mubr.f32.mxu0 0.0
    %514 = vmatmul.mubr.f32.gmra.mxu0 %v213
    %v515 = vpop.f32.mrf.mxu0
    %v516 = vadd.f32 %v80, %v515
    %v517 = vpop.f32.mrf.mxu0
    %518 = vmatprep.mubr.f32.mxu0 0.0
    %519 = vmatmul.mubr.f32.gmra.mxu0 %v216
    %v520 = vpop.f32.mrf.mxu0
    %v521 = vadd.f32 %v80, %v520
    %v522 = vpop.f32.mrf.mxu0
    %523 = vmatprep.mubr.f32.mxu0 0.0
    %524 = vmatmul.mubr.f32.gmra.mxu0 %v219
    %v525 = vpop.f32.mrf.mxu0
    %v526 = vadd.f32 %v80, %v525
    %v527 = vpop.f32.mrf.mxu0
    %528 = vmatprep.mubr.f32.mxu0 0.0
    %529 = vmatmul.mubr.f32.gmra.mxu0 %v222
    %v530 = vpop.f32.mrf.mxu0
    %v531 = vadd.f32 %v80, %v530
    %v532 = vpop.f32.mrf.mxu0
    %533 = vmatprep.mubr.f32.mxu0 0.0
    %534 = vmatmul.mubr.f32.gmra.mxu0 %v225
    %v535 = vpop.f32.mrf.mxu0
    %v536 = vadd.f32 %v80, %v535
    %v537 = vpop.f32.mrf.mxu0
    %538 = vmatprep.mubr.f32.mxu0 0.0
    %539 = vmatmul.mubr.f32.gmra.mxu0 %v228
    %v540 = vpop.f32.mrf.mxu0
    %v541 = vadd.f32 %v80, %v540
    %v542 = vpop.f32.mrf.mxu0
    %543 = vdwg.mxu0
    %v544 = vadd.f32 %v301, %v306
    %v545 = vadd.f32 %v544, %v311
    %v546 = vadd.f32 %v545, %v316
    %v547 = vadd.f32 %v546, %v321
    %v548 = vadd.f32 %v547, %v326
    %v549 = vadd.f32 %v548, %v331
    %v550 = vadd.f32 %v549, %v336
    %v551 = vadd.f32 %v550, %v341
    %v552 = vadd.f32 %v551, %v346
    %v553 = vadd.f32 %v552, %v351
    %v554 = vadd.f32 %v553, %v356
    %v555 = vadd.f32 %v554, %v361
    %v556 = vadd.f32 %v555, %v366
    %v557 = vadd.f32 %v556, %v371
    %v558 = vadd.f32 %v557, %v376
    %v559 = vadd.f32 %v558, %v381
    %v560 = vadd.f32 %v559, %v386
    %v561 = vadd.f32 %v560, %v391
    %v562 = vadd.f32 %v561, %v396
    %v563 = vadd.f32 %v562, %v401
    %v564 = vadd.f32 %v563, %v406
    %v565 = vadd.f32 %v564, %v411
    %v566 = vadd.f32 %v565, %v416
    %v567 = vadd.f32 %v566, %v421
    %v568 = vadd.f32 %v567, %v426
    %v569 = vadd.f32 %v568, %v431
    %v570 = vadd.f32 %v569, %v436
    %v571 = vadd.f32 %v570, %v441
    %v572 = vadd.f32 %v571, %v446
    %v573 = vadd.f32 %v572, %v451
    %v574 = vadd.f32 %v573, %v456
    %v575 = vadd.f32 %v574, %v461
    %v576 = vadd.f32 %v575, %v466
    %v577 = vadd.f32 %v576, %v471
    %v578 = vadd.f32 %v577, %v476
    %v579 = vadd.f32 %v578, %v481
    %v580 = vadd.f32 %v579, %v486
    %v581 = vadd.f32 %v580, %v491
    %v582 = vadd.f32 %v581, %v496
    %v583 = vadd.f32 %v582, %v501
    %v584 = vadd.f32 %v583, %v506
    %v585 = vadd.f32 %v584, %v511
    %v586 = vadd.f32 %v585, %v516
    %v587 = vadd.f32 %v586, %v521
    %v588 = vadd.f32 %v587, %v526
    %v589 = vadd.f32 %v588, %v531
    %v590 = vadd.f32 %v589, %v536
    %v591 = vadd.f32 %v590, %v541
    %v592 = vrot.slane %v591, 4
    %v593 = vadd.f32 %v591, %v592
    %v594 = vrot.slane %v593, 2
    %v595 = vadd.f32 %v593, %v594
    %v596 = vrot.slane %v595, 1
    %v597 = vadd.f32 %v595, %v596
    %v598 = vmul.f32 %v597, 0.0025510204
    %v599 = vmul.f32 %v301, %v301
    %v600 = vmul.f32 %v306, %v306
    %v601 = vmul.f32 %v311, %v311
    %v602 = vmul.f32 %v316, %v316
    %v603 = vmul.f32 %v321, %v321
    %v604 = vmul.f32 %v326, %v326
    %v605 = vmul.f32 %v331, %v331
    %v606 = vmul.f32 %v336, %v336
    %v607 = vmul.f32 %v341, %v341
    %v608 = vmul.f32 %v346, %v346
    %v609 = vmul.f32 %v351, %v351
    %v610 = vmul.f32 %v356, %v356
    %v611 = vmul.f32 %v361, %v361
    %v612 = vmul.f32 %v366, %v366
    %v613 = vmul.f32 %v371, %v371
    %v614 = vmul.f32 %v376, %v376
    %v615 = vmul.f32 %v381, %v381
    %v616 = vmul.f32 %v386, %v386
    %v617 = vmul.f32 %v391, %v391
    %v618 = vmul.f32 %v396, %v396
    %v619 = vmul.f32 %v401, %v401
    %v620 = vmul.f32 %v406, %v406
    %v621 = vmul.f32 %v411, %v411
    %v622 = vmul.f32 %v416, %v416
    %v623 = vmul.f32 %v421, %v421
    %v624 = vmul.f32 %v426, %v426
    %v625 = vmul.f32 %v431, %v431
    %v626 = vmul.f32 %v436, %v436
    %v627 = vmul.f32 %v441, %v441
    %v628 = vmul.f32 %v446, %v446
    %v629 = vmul.f32 %v451, %v451
    %v630 = vmul.f32 %v456, %v456
    %v631 = vmul.f32 %v461, %v461
    %v632 = vmul.f32 %v466, %v466
    %v633 = vmul.f32 %v471, %v471
    %v634 = vmul.f32 %v476, %v476
    %v635 = vmul.f32 %v481, %v481
    %v636 = vmul.f32 %v486, %v486
    %v637 = vmul.f32 %v491, %v491
    %v638 = vmul.f32 %v496, %v496
    %v639 = vmul.f32 %v501, %v501
    %v640 = vmul.f32 %v506, %v506
    %v641 = vmul.f32 %v511, %v511
    %v642 = vmul.f32 %v516, %v516
    %v643 = vmul.f32 %v521, %v521
    %v644 = vmul.f32 %v526, %v526
    %v645 = vmul.f32 %v531, %v531
    %v646 = vmul.f32 %v536, %v536
    %v647 = vmul.f32 %v541, %v541
    %v648 = vadd.f32 %v599, %v600
    %v649 = vadd.f32 %v648, %v601
    %v650 = vadd.f32 %v649, %v602
    %v651 = vadd.f32 %v650, %v603
    %v652 = vadd.f32 %v651, %v604
    %v653 = vadd.f32 %v652, %v605
    %v654 = vadd.f32 %v653, %v606
    %v655 = vadd.f32 %v654, %v607
    %v656 = vadd.f32 %v655, %v608
    %v657 = vadd.f32 %v656, %v609
    %v658 = vadd.f32 %v657, %v610
    %v659 = vadd.f32 %v658, %v611
    %v660 = vadd.f32 %v659, %v612
    %v661 = vadd.f32 %v660, %v613
    %v662 = vadd.f32 %v661, %v614
    %v663 = vadd.f32 %v662, %v615
    %v664 = vadd.f32 %v663, %v616
    %v665 = vadd.f32 %v664, %v617
    %v666 = vadd.f32 %v665, %v618
    %v667 = vadd.f32 %v666, %v619
    %v668 = vadd.f32 %v667, %v620
    %v669 = vadd.f32 %v668, %v621
    %v670 = vadd.f32 %v669, %v622
    %v671 = vadd.f32 %v670, %v623
    %v672 = vadd.f32 %v671, %v624
    %v673 = vadd.f32 %v672, %v625
    %v674 = vadd.f32 %v673, %v626
    %v675 = vadd.f32 %v674, %v627
    %v676 = vadd.f32 %v675, %v628
    %v677 = vadd.f32 %v676, %v629
    %v678 = vadd.f32 %v677, %v630
    %v679 = vadd.f32 %v678, %v631
    %v680 = vadd.f32 %v679, %v632
    %v681 = vadd.f32 %v680, %v633
    %v682 = vadd.f32 %v681, %v634
    %v683 = vadd.f32 %v682, %v635
    %v684 = vadd.f32 %v683, %v636
    %v685 = vadd.f32 %v684, %v637
    %v686 = vadd.f32 %v685, %v638
    %v687 = vadd.f32 %v686, %v639
    %v688 = vadd.f32 %v687, %v640
    %v689 = vadd.f32 %v688, %v641
    %v690 = vadd.f32 %v689, %v642
    %v691 = vadd.f32 %v690, %v643
    %v692 = vadd.f32 %v691, %v644
    %v693 = vadd.f32 %v692, %v645
    %v694 = vadd.f32 %v693, %v646
    %v695 = vadd.f32 %v694, %v647
    %v696 = vrot.slane %v695, 4
    %v697 = vadd.f32 %v695, %v696
    %v698 = vrot.slane %v697, 2
    %v699 = vadd.f32 %v697, %v698
    %v700 = vrot.slane %v699, 1
    %v701 = vadd.f32 %v699, %v700
    %v702 = vmul.f32 %v701, 0.0025510204
    %v703 = vmul.f32 %v598, %v598
    %v704 = vsub.f32 %v702, %v703
    %v705 = vld [vmem:[%s3] sm:$0x1]
    %v706 = vadd.f32 %v704, 1e-05
    %v707 = vrsqrt.pop %v706
    %v708 = vmul.f32 %v705, %v707
    %v709 = vld [vmem:[%s4] sm:$0x1]
    %v710 = vmul.f32 %v598, %v708
    %v711 = vsub.f32 %v709, %v710
    %v713 = vlaneseq
    %v714 = vshrl.u32 %v713, 7
    %v715 = vsub.s32 0, %v714
    %v716 = vrot.slane %v708, %v715
    %v718 = vmul.f32 %v301, %v716
    %v719 = vmul.f32 %v306, %v716
    %v720 = vmul.f32 %v311, %v716
    %v721 = vmul.f32 %v316, %v716
    %v722 = vmul.f32 %v321, %v716
    %v723 = vmul.f32 %v326, %v716
    %v724 = vmul.f32 %v331, %v716
    %v725 = vmul.f32 %v336, %v716
    %v726 = vmul.f32 %v341, %v716
    %v727 = vmul.f32 %v346, %v716
    %v728 = vmul.f32 %v351, %v716
    %v729 = vmul.f32 %v356, %v716
    %v730 = vmul.f32 %v361, %v716
    %v731 = vmul.f32 %v366, %v716
    %v732 = vmul.f32 %v371, %v716
    %v733 = vmul.f32 %v376, %v716
    %v734 = vmul.f32 %v381, %v716
    %v735 = vmul.f32 %v386, %v716
    %v736 = vmul.f32 %v391, %v716
    %v737 = vmul.f32 %v396, %v716
    %v738 = vmul.f32 %v401, %v716
    %v739 = vmul.f32 %v406, %v716
    %v740 = vmul.f32 %v411, %v716
    %v741 = vmul.f32 %v416, %v716
    %v742 = vmul.f32 %v421, %v716
    %v743 = vmul.f32 %v426, %v716
    %v744 = vmul.f32 %v431, %v716
    %v745 = vmul.f32 %v436, %v716
    %v746 = vmul.f32 %v441, %v716
    %v747 = vmul.f32 %v446, %v716
    %v748 = vmul.f32 %v451, %v716
    %v749 = vmul.f32 %v456, %v716
    %v750 = vmul.f32 %v461, %v716
    %v751 = vmul.f32 %v466, %v716
    %v752 = vmul.f32 %v471, %v716
    %v753 = vmul.f32 %v476, %v716
    %v754 = vmul.f32 %v481, %v716
    %v755 = vmul.f32 %v486, %v716
    %v756 = vmul.f32 %v491, %v716
    %v757 = vmul.f32 %v496, %v716
    %v758 = vmul.f32 %v501, %v716
    %v759 = vmul.f32 %v506, %v716
    %v760 = vmul.f32 %v511, %v716
    %v761 = vmul.f32 %v516, %v716
    %v762 = vmul.f32 %v521, %v716
    %v763 = vmul.f32 %v526, %v716
    %v764 = vmul.f32 %v531, %v716
    %v765 = vmul.f32 %v536, %v716
    %v766 = vmul.f32 %v541, %v716
    %v768 = vlaneseq
    %v769 = vshrl.u32 %v768, 7
    %v770 = vsub.s32 0, %v769
    %v771 = vrot.slane %v711, %v770
    %v773 = vadd.f32 %v718, %v771
    %v774 = vadd.f32 %v719, %v771
    %v775 = vadd.f32 %v720, %v771
    %v776 = vadd.f32 %v721, %v771
    %v777 = vadd.f32 %v722, %v771
    %v778 = vadd.f32 %v723, %v771
    %v779 = vadd.f32 %v724, %v771
    %v780 = vadd.f32 %v725, %v771
    %v781 = vadd.f32 %v726, %v771
    %v782 = vadd.f32 %v727, %v771
    %v783 = vadd.f32 %v728, %v771
    %v784 = vadd.f32 %v729, %v771
    %v785 = vadd.f32 %v730, %v771
    %v786 = vadd.f32 %v731, %v771
    %v787 = vadd.f32 %v732, %v771
    %v788 = vadd.f32 %v733, %v771
    %v789 = vadd.f32 %v734, %v771
    %v790 = vadd.f32 %v735, %v771
    %v791 = vadd.f32 %v736, %v771
    %v792 = vadd.f32 %v737, %v771
    %v793 = vadd.f32 %v738, %v771
    %v794 = vadd.f32 %v739, %v771
    %v795 = vadd.f32 %v740, %v771
    %v796 = vadd.f32 %v741, %v771
    %v797 = vadd.f32 %v742, %v771
    %v798 = vadd.f32 %v743, %v771
    %v799 = vadd.f32 %v744, %v771
    %v800 = vadd.f32 %v745, %v771
    %v801 = vadd.f32 %v746, %v771
    %v802 = vadd.f32 %v747, %v771
    %v803 = vadd.f32 %v748, %v771
    %v804 = vadd.f32 %v749, %v771
    %v805 = vadd.f32 %v750, %v771
    %v806 = vadd.f32 %v751, %v771
    %v807 = vadd.f32 %v752, %v771
    %v808 = vadd.f32 %v753, %v771
    %v809 = vadd.f32 %v754, %v771
    %v810 = vadd.f32 %v755, %v771
    %v811 = vadd.f32 %v756, %v771
    %v812 = vadd.f32 %v757, %v771
    %v813 = vadd.f32 %v758, %v771
    %v814 = vadd.f32 %v759, %v771
    %v815 = vadd.f32 %v760, %v771
    %v816 = vadd.f32 %v761, %v771
    %v817 = vadd.f32 %v762, %v771
    %v818 = vadd.f32 %v763, %v771
    %v819 = vadd.f32 %v764, %v771
    %v820 = vadd.f32 %v765, %v771
    %v821 = vadd.f32 %v766, %v771
    %vm835 = vcmask 1045504
    %v836 = vrot.slane %v785, 2
    %v837 = vrot.slane %v786, 2
    %v838 = vsel %vm835, %v836, %v837
    %v839 = vrot.slane %v787, 2
    %v840 = vsel %vm835, %v837, %v839
    %v841 = vrot.slane %v788, 2
    %v842 = vsel %vm835, %v839, %v841
    %v843 = vrot.slane %v789, 2
    %v844 = vsel %vm835, %v841, %v843
    %v845 = vrot.slane %v790, 2
    %v846 = vsel %vm835, %v843, %v845
    %v847 = vrot.slane %v791, 2
    %v848 = vsel %vm835, %v845, %v847
    %v849 = vrot.slane %v792, 2
    %v850 = vsel %vm835, %v847, %v849
    %v851 = vrot.slane %v793, 2
    %v852 = vsel %vm835, %v849, %v851
    %v853 = vrot.slane %v794, 2
    %v854 = vsel %vm835, %v851, %v853
    %v855 = vrot.slane %v795, 2
    %v856 = vsel %vm835, %v853, %v855
    %v857 = vrot.slane %v796, 2
    %v858 = vsel %vm835, %v855, %v857
    %v859 = vrot.slane %v797, 2
    %v860 = vsel %vm835, %v857, %v859
    %v874 = vmax.f32 %v773, %v838
    %v875 = vmax.f32 %v774, %v840
    %v876 = vmax.f32 %v775, %v842
    %v877 = vmax.f32 %v776, %v844
    %v878 = vmax.f32 %v777, %v846
    %v879 = vmax.f32 %v778, %v848
    %v880 = vmax.f32 %v779, %v850
    %v881 = vmax.f32 %v780, %v852
    %v882 = vmax.f32 %v781, %v854
    %v883 = vmax.f32 %v782, %v856
    %v884 = vmax.f32 %v783, %v858
    %v885 = vmax.f32 %v784, %v860
    %v886 = vmax.f32 %v785, %v859
    %v900 = vrot.slane %v809, 2
    %v901 = vrot.slane %v810, 2
    %v902 = vsel %vm835, %v900, %v901
    %v903 = vrot.slane %v811, 2
    %v904 = vsel %vm835, %v901, %v903
    %v905 = vrot.slane %v812, 2
    %v906 = vsel %vm835, %v903, %v905
    %v907 = vrot.slane %v813, 2
    %v908 = vsel %vm835, %v905, %v907
    %v909 = vrot.slane %v814, 2
    %v910 = vsel %vm835, %v907, %v909
    %v911 = vrot.slane %v815, 2
    %v912 = vsel %vm835, %v909, %v911
    %v913 = vrot.slane %v816, 2
    %v914 = vsel %vm835, %v911, %v913
    %v915 = vrot.slane %v817, 2
    %v916 = vsel %vm835, %v913, %v915
    %v917 = vrot.slane %v818, 2
    %v918 = vsel %vm835, %v915, %v917
    %v919 = vrot.slane %v819, 2
    %v920 = vsel %vm835, %v917, %v919
    %v921 = vrot.slane %v820, 2
    %v922 = vsel %vm835, %v919, %v921
    %v923 = vrot.slane %v821, 2
    %v924 = vsel %vm835, %v921, %v923
    %v938 = vmax.f32 %v797, %v902
    %v939 = vmax.f32 %v798, %v904
    %v940 = vmax.f32 %v799, %v906
    %v941 = vmax.f32 %v800, %v908
    %v942 = vmax.f32 %v801, %v910
    %v943 = vmax.f32 %v802, %v912
    %v944 = vmax.f32 %v803, %v914
    %v945 = vmax.f32 %v804, %v916
    %v946 = vmax.f32 %v805, %v918
    %v947 = vmax.f32 %v806, %v920
    %v948 = vmax.f32 %v807, %v922
    %v949 = vmax.f32 %v808, %v924
    %v950 = vmax.f32 %v809, %v923
    %v964 = vrot.slane %v938, 4
    %v965 = vrot.slane %v939, 4
    %v966 = vsel %vm230, %v964, %v965
    %v967 = vrot.slane %v940, 4
    %v968 = vsel %vm230, %v965, %v967
    %v969 = vrot.slane %v941, 4
    %v970 = vsel %vm230, %v967, %v969
    %v971 = vrot.slane %v942, 4
    %v972 = vsel %vm230, %v969, %v971
    %v973 = vrot.slane %v943, 4
    %v974 = vsel %vm230, %v971, %v973
    %v975 = vrot.slane %v944, 4
    %v976 = vsel %vm230, %v973, %v975
    %v977 = vrot.slane %v945, 4
    %v978 = vsel %vm230, %v975, %v977
    %v979 = vrot.slane %v946, 4
    %v980 = vsel %vm230, %v977, %v979
    %v981 = vrot.slane %v947, 4
    %v982 = vsel %vm230, %v979, %v981
    %v983 = vrot.slane %v948, 4
    %v984 = vsel %vm230, %v981, %v983
    %v985 = vrot.slane %v949, 4
    %v986 = vsel %vm230, %v983, %v985
    %v987 = vrot.slane %v950, 4
    %v988 = vsel %vm230, %v985, %v987
    %v1002 = vmax.f32 %v874, %v966
    %v1003 = vmax.f32 %v875, %v968
    %v1004 = vmax.f32 %v876, %v970
    %v1005 = vmax.f32 %v877, %v972
    %v1006 = vmax.f32 %v878, %v974
    %v1007 = vmax.f32 %v879, %v976
    %v1008 = vmax.f32 %v880, %v978
    %v1009 = vmax.f32 %v881, %v980
    %v1010 = vmax.f32 %v882, %v982
    %v1011 = vmax.f32 %v883, %v984
    %v1012 = vmax.f32 %v884, %v986
    %v1013 = vmax.f32 %v885, %v988
    %v1014 = vmax.f32 %v886, %v987
    %v1015 = vmax.f32 %v1002, 0.0
    %v1016 = vmax.f32 %v1003, 0.0
    %v1017 = vmax.f32 %v1004, 0.0
    %v1018 = vmax.f32 %v1005, 0.0
    %v1019 = vmax.f32 %v1006, 0.0
    %v1020 = vmax.f32 %v1007, 0.0
    %v1021 = vmax.f32 %v1008, 0.0
    %v1022 = vmax.f32 %v1009, 0.0
    %v1023 = vmax.f32 %v1010, 0.0
    %v1024 = vmax.f32 %v1011, 0.0
    %v1025 = vmax.f32 %v1012, 0.0
    %v1026 = vmax.f32 %v1013, 0.0
    %v1027 = vmax.f32 %v1014, 0.0
    %1028 = vst [vmem:[#allocation2] sm:$0xff] %v1015
    %1029 = vst [vmem:[#allocation2 + $0x8] sm:$0xff] %v1016
    %1030 = vst [vmem:[#allocation2 + $0x10] sm:$0xff] %v1017
    %1031 = vst [vmem:[#allocation2 + $0x18] sm:$0xff] %v1018
    %1032 = vst [vmem:[#allocation2 + $0x20] sm:$0xff] %v1019
    %1033 = vst [vmem:[#allocation2 + $0x28] sm:$0xff] %v1020
    %1034 = vst [vmem:[#allocation2 + $0x30] sm:$0xff] %v1021
    %1035 = vst [vmem:[#allocation2 + $0x38] sm:$0xff] %v1022
    %1036 = vst [vmem:[#allocation2 + $0x40] sm:$0xff] %v1023
    %1037 = vst [vmem:[#allocation2 + $0x48] sm:$0xff] %v1024
    %1038 = vst [vmem:[#allocation2 + $0x50] sm:$0xff] %v1025
    %1039 = vst [vmem:[#allocation2 + $0x58] sm:$0xff] %v1026
    %1040 = vst [vmem:[#allocation2 + $0x60] sm:$0x3] %v1027
    // Predicated region
    $region22: #{tpu_custom_call.1} parent=1 // pred_check
      _
    $region23: #{tpu_custom_call.1} parent=1 // pred_check_branch
      %1042 = sbr.rel (0) target = $region25
    $region24: #{tpu_custom_call.1} parent=1 // pred_region
      %s1044 = ssub.s32 1664, 1664
      %1045 = vsyncadd [#allocation3], %s1044
      %s1046 = sshll.u32 [#allocation2], 4
      %s1047 = int_to_ptr.vmem [resolvable:$true] %s1046
      %1052 = dma.vmem_to_hbm [thread:$0]  %s1047, 1664, %s5, [#allocation3], 128, 128, 8
    $region25: #{tpu_custom_call.1} parent=1 // pred_fallthru
      _
    // Predicated region
    $region26: #{tpu_custom_call.1} parent=1 // pred_check
      _
    $region27: #{tpu_custom_call.1} parent=1 // pred_check_branch
      %1054 = sbr.rel (0) target = $region29
    $region28: #{tpu_custom_call.1} parent=1 // pred_region
      %1055 = dma.done [#allocation3], 1664
    $region29: #{tpu_custom_call.1} parent=1 // pred_fallthru
      _
    %1056 = vsyncpa [#allocation3], 1

</llo_original>
